<compile_context>
chip_gen: v5e
topology: v5e:2x2
jax: 0.10.0
libtpu: 0.0.40
codegen_flags: <defaults>
</compile_context>

<pallas_src>
import math

import jax
import jax.numpy as jnp
from jax.experimental import pallas as pl
from jax.experimental.pallas import tpu as pltpu

F32 = jnp.float32


# ---------------------------------------------------------------------------
# Pallas kernel: fused AdaptiveAvgPool2d((1,1)) + Linear + repeat_interleave
# ---------------------------------------------------------------------------
def _direct_pooling_kernel(x_ref, w_ref, b_ref, o_ref):
    """x_ref: [Bt, C, HW] (spatial on lanes), w_ref: [C, hidden] (pre-transposed),
    b_ref: [1, hidden], o_ref: [Bt, rt*hidden] (lane-dense, rt fused copies)."""
    hidden = w_ref.shape[1]
    rt = o_ref.shape[1] // hidden
    inv_hw = 1.0 / float(x_ref.shape[-1])

    # Upcast before the reduce (bf16-input safe on all gens, incl. v5e's no-bf16 VPU).
    x = x_ref[...].astype(jnp.float32)
    pooled = jnp.sum(x, axis=-1) * inv_hw                       # [Bt, C] global avg pool

    # patch2query: [Bt, C] @ [C, hidden] + bias, f32 accumulation on the MXU.
    proj = (jnp.dot(pooled, w_ref[...],
                    preferred_element_type=jnp.float32,
                    precision=jax.lax.Precision.HIGHEST)
            + b_ref[...]).astype(o_ref.dtype)                   # [Bt, hidden]

    # Fused repeat_interleave: write the same block at each 128-aligned lane offset.
    for r in range(rt):
        o_ref[:, pl.ds(r * hidden, hidden)] = proj


# ---------------------------------------------------------------------------
# Parameters (nn.Linear with xavier_uniform_ weight, default-uniform bias)
# Stored already in kernel layout: weight pre-transposed [C, hidden], bias [1, hidden].
# ---------------------------------------------------------------------------
def init_params(key, input_dim, hidden_dim):
    wk, bk = jax.random.split(key)
    w_bound = math.sqrt(6.0 / (input_dim + hidden_dim))         # xavier_uniform_
    b_bound = 1.0 / math.sqrt(input_dim)                        # nn.Linear default bias
    w = jax.random.uniform(wk, (hidden_dim, input_dim), F32, -w_bound, w_bound)
    b = jax.random.uniform(bk, (hidden_dim,), F32, -b_bound, b_bound)
    return {"w_t": jnp.asarray(w.T), "b": b[None, :]}


# ---------------------------------------------------------------------------
# Forward pass (Pallas)
# ---------------------------------------------------------------------------
def direct_pooling(params, patch_feature, repeat_times=1, block_b=8):
    """patch_feature: [B, C, H, W] -> [B * repeat_times, 1, hidden_dim]."""
    b, c, h, w = patch_feature.shape
    hidden = params["w_t"].shape[1]
    hw = h * w

    # Contiguous, metadata-only reshape: spatial axis onto the 128-lane axis.
    x = patch_feature.reshape(b, c, hw)

    # Batch tile of 8 sublanes (pad when B is not a multiple); full dims when B < 8.
    bt = block_b if b >= block_b else b
    b_pad = -(-b // bt) * bt
    if b_pad != b:
        x = jnp.pad(x, ((0, b_pad - b), (0, 0), (0, 0)))
    nb = b_pad // bt

    out = pl.pallas_call(
        _direct_pooling_kernel,
        out_shape=jax.ShapeDtypeStruct((b_pad, repeat_times * hidden), F32),
        grid=(nb,),
        in_specs=[
            pl.BlockSpec((bt, c, hw), lambda i: (i, 0, 0)),       # x batch block
            pl.BlockSpec((c, hidden), lambda i: (0, 0)),          # weight (resident)
            pl.BlockSpec((1, hidden), lambda i: (0, 0)),          # bias (resident)
        ],
        out_specs=pl.BlockSpec((bt, repeat_times * hidden), lambda i: (i, 0)),
        compiler_params=pltpu.CompilerParams(
            dimension_semantics=("parallel",)),                   # megacore-shard batch
    )(x, params["w_t"], params["b"])

    if b_pad != b:
        out = out[:b]
    # view(1,B,hid) -> repeat_interleave -> permute  ==  row-major reshape of [B, rt*hid].
    return out.reshape(b * repeat_times, 1, hidden)


# ---------------------------------------------------------------------------
# Pure-JAX reference (mirrors the PyTorch forward directly)
# ---------------------------------------------------------------------------
def reference_forward(params, patch_feature, repeat_times=1):
    b = patch_feature.shape[0]
    pooled = jnp.mean(patch_feature.astype(F32), axis=(2, 3))              # [B, C]
    proj = jnp.dot(pooled, params["w_t"],
                   precision=jax.lax.Precision.HIGHEST) + params["b"]      # [B, hidden]
    out = jnp.repeat(proj.reshape(1, b, -1), repeat_times, axis=1)         # [1, B*rt, hid]
    return jnp.transpose(out, (1, 0, 2))                                   # [B*rt, 1, hid]


if __name__ == "__main__":
    # Small but representative shapes: B=8 (full 8-sublane tile), C=32, 16x16 spatial,
    # hidden_dim=128 (lane-dense output), repeat_times=2.
    input_dim, hidden_dim, repeat_times = 32, 128, 2
    B, H, W = 8, 16, 16

    root = jax.random.PRNGKey(0)
    pkey, xkey = jax.random.split(root)
    params = init_params(pkey, input_dim, hidden_dim)
    patch_feature = jax.random.normal(xkey, (B, input_dim, H, W), F32)

    out = direct_pooling(params, patch_feature, repeat_times)
    out = jax.block_until_ready(out)

    ref = reference_forward(params, patch_feature, repeat_times)
    assert out.shape == (B * repeat_times, 1, hidden_dim), out.shape
    max_err = float(jnp.max(jnp.abs(out - ref)))
    ref_mag = float(jnp.max(jnp.abs(ref)))
    if not bool(jnp.all(jnp.isfinite(out))) or max_err > 1e-4 * (1.0 + ref_mag):
        raise AssertionError(f"mismatch: max_abs_err={max_err}, ref_mag={ref_mag}")
    print("KERNEL_OK")
</pallas_src>

<mosaic_0001>
module attributes {stable_mosaic.version = 11 : i64} {
  func.func @_direct_pooling_kernel(%arg0: i32, %arg1: memref<8x32x256xf32, #tpu.memory_space<vmem>>, %arg2: memref<32x128xf32, #tpu.memory_space<vmem>>, %arg3: memref<1x128xf32, #tpu.memory_space<vmem>>, %arg4: memref<8x256xf32, #tpu.memory_space<vmem>>) attributes {dimension_semantics = [#tpu.dimension_semantics<parallel>], iteration_bounds = array<i64: 1>, scalar_prefetch = 0 : i64, scratch_operands = 0 : i64, tpu.core_type = #tpu.core_type<tc>, window_params = [{transform_indices = @transform_0, window_bounds = array<i64: 8, 32, 256>}, {pipeline_mode = #tpu.pipeline_mode<synchronous>, transform_indices = @transform_1, window_bounds = array<i64: 32, 128>}, {pipeline_mode = #tpu.pipeline_mode<synchronous>, transform_indices = @transform_2, window_bounds = array<i64: 1, 128>}, {transform_indices = @transform_3, window_bounds = array<i64: 8, 256>}]} {
    %c0 = arith.constant 0 : index
    %c0_0 = arith.constant 0 : index
    %c0_1 = arith.constant 0 : index
    %0 = vector.load %arg1[%c0, %c0_0, %c0_1] : memref<8x32x256xf32, #tpu.memory_space<vmem>>, vector<8x32x256xf32>
    %cst = arith.constant dense<0.000000e+00> : vector<8x32xf32>
    %1 = vector.multi_reduction <add>, %0, %cst [2] : vector<8x32x256xf32> to vector<8x32xf32>
    %cst_2 = arith.constant 3.906250e-03 : f32
    %2 = vector.broadcast %cst_2 : f32 to vector<8x32xf32>
    %3 = arith.mulf %1, %2 : vector<8x32xf32>
    %c0_3 = arith.constant 0 : index
    %c0_4 = arith.constant 0 : index
    %4 = vector.load %arg2[%c0_3, %c0_4] : memref<32x128xf32, #tpu.memory_space<vmem>>, vector<32x128xf32>
    %cst_5 = arith.constant dense<0.000000e+00> : vector<8x128xf32>
    %5 = tpu.matmul %3, %4, %cst_5 {dimension_numbers = #tpu.dot_dimension_numbers<[1], [0], [0], [1], [0, 0, 1, 1], [], []>, precision = #tpu.contract_precision<fp32>} : vector<8x32xf32>, vector<32x128xf32>, vector<8x128xf32> -> vector<8x128xf32>
    %c0_6 = arith.constant 0 : index
    %c0_7 = arith.constant 0 : index
    %6 = vector.load %arg3[%c0_6, %c0_7] : memref<1x128xf32, #tpu.memory_space<vmem>>, vector<1x128xf32>
    %7 = vector.broadcast %6 : vector<1x128xf32> to vector<8x128xf32>
    %8 = arith.addf %5, %7 : vector<8x128xf32>
    %c0_8 = arith.constant 0 : index
    %c0_9 = arith.constant 0 : index
    %9 = vector.load %arg4[%c0_8, %c0_9] : memref<8x256xf32, #tpu.memory_space<vmem>>, vector<8x128xf32>
    tpu.vector_store %arg4[%c0_8, %c0_9], %8 {strides = array<i32>} : memref<8x256xf32, #tpu.memory_space<vmem>>, vector<8x128xf32>,
    %c0_10 = arith.constant 0 : index
    %c128 = arith.constant 128 : index
    %10 = vector.load %arg4[%c0_10, %c128] : memref<8x256xf32, #tpu.memory_space<vmem>>, vector<8x128xf32>
    tpu.vector_store %arg4[%c0_10, %c128], %8 {strides = array<i32>} : memref<8x256xf32, #tpu.memory_space<vmem>>, vector<8x128xf32>,
    return
  }
  func.func @transform_0(%arg0: i32) -> (i32, i32, i32) {
    %c0_i32 = arith.constant 0 : i32
    %c0_i32_0 = arith.constant 0 : i32
    %c0_i32_1 = arith.constant 0 : i32
    return %arg0, %c0_i32, %c0_i32_0 : i32, i32, i32
  }
  func.func @transform_1(%arg0: i32) -> (i32, i32) {
    %c0_i32 = arith.constant 0 : i32
    %c0_i32_0 = arith.constant 0 : i32
    %c0_i32_1 = arith.constant 0 : i32
    return %c0_i32, %c0_i32_0 : i32, i32
  }
  func.func @transform_2(%arg0: i32) -> (i32, i32) {
    %c0_i32 = arith.constant 0 : i32
    %c0_i32_0 = arith.constant 0 : i32
    %c0_i32_1 = arith.constant 0 : i32
    return %c0_i32, %c0_i32_0 : i32, i32
  }
  func.func @transform_3(%arg0: i32) -> (i32, i32) {
    %c0_i32 = arith.constant 0 : i32
    %c0_i32_0 = arith.constant 0 : i32
    return %arg0, %c0_i32 : i32, i32
  }
}

</mosaic_0001>

<llo_original>
// kernel: tpu_custom_call.1
$region0: #{tpu_custom_call.1}
  #allocation0 [shape = 'u32[]', space=smem, size = 0x4, offset = 0x4, fixed_abs, tag = 'smem constant byte address 0x4 - core index']
  #allocation1 [shape = 'u32[72,128]{1,0:T(1,128)}', space=vmem, size = 0x9000, scoped, tag = 'internal scratch']
  %s0 = inlined_call_operand.hbm [shape: f32[8,32,256], index: 0, kind: input, shape index: {}]
  %s1 = inlined_call_operand.hbm [shape: f32[32,128], index: 1, kind: input, shape index: {}]
  %s2 = inlined_call_operand.vmem [shape: f32[1,128], index: 2, kind: input, shape index: {}]
  %s3 = inlined_call_operand.hbm [shape: f32[8,256], index: 3, kind: output, shape index: {}]
  %s4 = sld [smem:[#allocation0]]
  $region30: #{tpu_custom_call.1} parent=0
    _
  %s6 = ssub.s32 1, %s4
  %s7 = scalar_select 0, %s6, %s4
  $region1: #{tpu_custom_call.1} parent=0
    #allocation2 [shape = 'u8[262144]{0}', space=vmem, size = 0x40000, scoped, tag = 'input window, operand 0, single buffered']
    #allocation3 [shape = 's32[1]{0}', space=sflag, size = 0x4, scoped, tag = 'scoped memory for tpu_custom_call.1']
    #allocation4 [shape = 's32[1]{0}', space=sflag, size = 0x4, scoped, tag = 'scoped memory for tpu_custom_call.1']
    #allocation5 [shape = 'u8[16384]{0}', space=vmem, size = 0x4000, scoped, tag = 'input window, operand 1, single buffered']
    #allocation6 [shape = 's32[1]{0}', space=sflag, size = 0x4, scoped, tag = 'scoped memory for tpu_custom_call.1']
    #allocation7 [shape = 'u8[8192]{0}', space=vmem, size = 0x2000, scoped, tag = 'output window, operand 0, single buffered']
    %8 = vsyncpa [#allocation3], 0
    %9 = vsyncpa [#allocation6], 0
    %10 = vsyncpa [#allocation4], 0
    // Predicated region
    $region2: #{tpu_custom_call.1} parent=1 // pred_check
      _
    $region3: #{tpu_custom_call.1} parent=1 // pred_check_branch
      %12 = sbr.rel (0) target = $region5
    $region4: #{tpu_custom_call.1} parent=1 // pred_region
      %14 = vsyncadd [#allocation3], 0
      %s15 = sshll.u32 %s0, 4
      %s16 = int_to_ptr.hbm [resolvable:$true] %s15
      %s17 = sshll.u32 [#allocation2], 4
      %s18 = int_to_ptr.vmem [resolvable:$true] %s17
      %23 = dma.hbm_to_vmem [thread:$0]  %s16, 8192, %s18, [#allocation3], 256, 256, 16
    $region5: #{tpu_custom_call.1} parent=1 // pred_fallthru
      _
    // Predicated region
    $region6: #{tpu_custom_call.1} parent=1 // pred_check
      _
    $region7: #{tpu_custom_call.1} parent=1 // pred_check_branch
      %25 = sbr.rel (0) target = $region9
    $region8: #{tpu_custom_call.1} parent=1 // pred_region
      %27 = vsyncadd [#allocation6], 0
      %s28 = sshll.u32 %s1, 4
      %s29 = int_to_ptr.hbm [resolvable:$true] %s28
      %s30 = sshll.u32 [#allocation5], 4
      %s31 = int_to_ptr.vmem [resolvable:$true] %s30
      %36 = dma.hbm_to_vmem [thread:$0]  %s29, 512, %s31, [#allocation6], 128, 128, 8
    $region9: #{tpu_custom_call.1} parent=1 // pred_fallthru
      _
    // Predicated region
    $region10: #{tpu_custom_call.1} parent=1 // pred_check
      _
    $region11: #{tpu_custom_call.1} parent=1 // pred_check_branch
      %38 = sbr.rel (0) target = $region13
    $region12: #{tpu_custom_call.1} parent=1 // pred_region
      _
    $region13: #{tpu_custom_call.1} parent=1 // pred_fallthru
      _
    // Predicated region
    $region14: #{tpu_custom_call.1} parent=1 // pred_check
      _
    $region15: #{tpu_custom_call.1} parent=1 // pred_check_branch
      %40 = sbr.rel (0) target = $region17
    $region16: #{tpu_custom_call.1} parent=1 // pred_region
      %42 = dma.done [#allocation3], 8192
    $region17: #{tpu_custom_call.1} parent=1 // pred_fallthru
      _
    // Predicated region
    $region18: #{tpu_custom_call.1} parent=1 // pred_check
      _
    $region19: #{tpu_custom_call.1} parent=1 // pred_check_branch
      %44 = sbr.rel (0) target = $region21
    $region20: #{tpu_custom_call.1} parent=1 // pred_region
      %46 = dma.done [#allocation6], 512
    $region21: #{tpu_custom_call.1} parent=1 // pred_fallthru
      _
    %v47 = vld [vmem:[#allocation2] sm:$0xff]
    %v48 = vld [vmem:[#allocation2 + $0x8] sm:$0xff]
    %v49 = vld [vmem:[#allocation2 + $0x10] sm:$0xff]
    %v50 = vld [vmem:[#allocation2 + $0x18] sm:$0xff]
    %v51 = vld [vmem:[#allocation2 + $0x20] sm:$0xff]
    %v52 = vld [vmem:[#allocation2 + $0x28] sm:$0xff]
    %v53 = vld [vmem:[#allocation2 + $0x30] sm:$0xff]
    %v54 = vld [vmem:[#allocation2 + $0x38] sm:$0xff]
    %v55 = vld [vmem:[#allocation2 + $0x40] sm:$0xff]
    %v56 = vld [vmem:[#allocation2 + $0x48] sm:$0xff]
    %v57 = vld [vmem:[#allocation2 + $0x50] sm:$0xff]
    %v58 = vld [vmem:[#allocation2 + $0x58] sm:$0xff]
    %v59 = vld [vmem:[#allocation2 + $0x60] sm:$0xff]
    %v60 = vld [vmem:[#allocation2 + $0x68] sm:$0xff]
    %v61 = vld [vmem:[#allocation2 + $0x70] sm:$0xff]
    %v62 = vld [vmem:[#allocation2 + $0x78] sm:$0xff]
    %v63 = vld [vmem:[#allocation2 + $0x80] sm:$0xff]
    %v64 = vld [vmem:[#allocation2 + $0x88] sm:$0xff]
    %v65 = vld [vmem:[#allocation2 + $0x90] sm:$0xff]
    %v66 = vld [vmem:[#allocation2 + $0x98] sm:$0xff]
    %v67 = vld [vmem:[#allocation2 + $0xa0] sm:$0xff]
    %v68 = vld [vmem:[#allocation2 + $0xa8] sm:$0xff]
    %v69 = vld [vmem:[#allocation2 + $0xb0] sm:$0xff]
    %v70 = vld [vmem:[#allocation2 + $0xb8] sm:$0xff]
    %v71 = vld [vmem:[#allocation2 + $0xc0] sm:$0xff]
    %v72 = vld [vmem:[#allocation2 + $0xc8] sm:$0xff]
    %v73 = vld [vmem:[#allocation2 + $0xd0] sm:$0xff]
    %v74 = vld [vmem:[#allocation2 + $0xd8] sm:$0xff]
    %v75 = vld [vmem:[#allocation2 + $0xe0] sm:$0xff]
    %v76 = vld [vmem:[#allocation2 + $0xe8] sm:$0xff]
    %v77 = vld [vmem:[#allocation2 + $0xf0] sm:$0xff]
    %v78 = vld [vmem:[#allocation2 + $0xf8] sm:$0xff]
    %v79 = vld [vmem:[#allocation2 + $0x100] sm:$0xff]
    %v80 = vld [vmem:[#allocation2 + $0x108] sm:$0xff]
    %v81 = vld [vmem:[#allocation2 + $0x110] sm:$0xff]
    %v82 = vld [vmem:[#allocation2 + $0x118] sm:$0xff]
    %v83 = vld [vmem:[#allocation2 + $0x120] sm:$0xff]
    %v84 = vld [vmem:[#allocation2 + $0x128] sm:$0xff]
    %v85 = vld [vmem:[#allocation2 + $0x130] sm:$0xff]
    %v86 = vld [vmem:[#allocation2 + $0x138] sm:$0xff]
    %v87 = vld [vmem:[#allocation2 + $0x140] sm:$0xff]
    %v88 = vld [vmem:[#allocation2 + $0x148] sm:$0xff]
    %v89 = vld [vmem:[#allocation2 + $0x150] sm:$0xff]
    %v90 = vld [vmem:[#allocation2 + $0x158] sm:$0xff]
    %v91 = vld [vmem:[#allocation2 + $0x160] sm:$0xff]
    %v92 = vld [vmem:[#allocation2 + $0x168] sm:$0xff]
    %v93 = vld [vmem:[#allocation2 + $0x170] sm:$0xff]
    %v94 = vld [vmem:[#allocation2 + $0x178] sm:$0xff]
    %v95 = vld [vmem:[#allocation2 + $0x180] sm:$0xff]
    %v96 = vld [vmem:[#allocation2 + $0x188] sm:$0xff]
    %v97 = vld [vmem:[#allocation2 + $0x190] sm:$0xff]
    %v98 = vld [vmem:[#allocation2 + $0x198] sm:$0xff]
    %v99 = vld [vmem:[#allocation2 + $0x1a0] sm:$0xff]
    %v100 = vld [vmem:[#allocation2 + $0x1a8] sm:$0xff]
    %v101 = vld [vmem:[#allocation2 + $0x1b0] sm:$0xff]
    %v102 = vld [vmem:[#allocation2 + $0x1b8] sm:$0xff]
    %v103 = vld [vmem:[#allocation2 + $0x1c0] sm:$0xff]
    %v104 = vld [vmem:[#allocation2 + $0x1c8] sm:$0xff]
    %v105 = vld [vmem:[#allocation2 + $0x1d0] sm:$0xff]
    %v106 = vld [vmem:[#allocation2 + $0x1d8] sm:$0xff]
    %v107 = vld [vmem:[#allocation2 + $0x1e0] sm:$0xff]
    %v108 = vld [vmem:[#allocation2 + $0x1e8] sm:$0xff]
    %v109 = vld [vmem:[#allocation2 + $0x1f0] sm:$0xff]
    %v110 = vld [vmem:[#allocation2 + $0x1f8] sm:$0xff]
    %v111 = vadd.f32 %v47, %v48
    %112 = vadd.xlane.f32.xlu0 %v111
    %v113 = vpop.xlane.xlu0 %112
    %v114 = vadd.f32 %v49, %v50
    %115 = vadd.xlane.f32.xlu0 %v114
    %v116 = vpop.xlane.xlu0 %115
    %v117 = vadd.f32 %v51, %v52
    %118 = vadd.xlane.f32.xlu0 %v117
    %v119 = vpop.xlane.xlu0 %118
    %v120 = vadd.f32 %v53, %v54
    %121 = vadd.xlane.f32.xlu0 %v120
    %v122 = vpop.xlane.xlu0 %121
    %v123 = vadd.f32 %v55, %v56
    %124 = vadd.xlane.f32.xlu0 %v123
    %v125 = vpop.xlane.xlu0 %124
    %v126 = vadd.f32 %v57, %v58
    %127 = vadd.xlane.f32.xlu0 %v126
    %v128 = vpop.xlane.xlu0 %127
    %v129 = vadd.f32 %v59, %v60
    %130 = vadd.xlane.f32.xlu0 %v129
    %v131 = vpop.xlane.xlu0 %130
    %v132 = vadd.f32 %v61, %v62
    %133 = vadd.xlane.f32.xlu0 %v132
    %v134 = vpop.xlane.xlu0 %133
    %v135 = vadd.f32 %v63, %v64
    %136 = vadd.xlane.f32.xlu0 %v135
    %v137 = vpop.xlane.xlu0 %136
    %v138 = vadd.f32 %v65, %v66
    %139 = vadd.xlane.f32.xlu0 %v138
    %v140 = vpop.xlane.xlu0 %139
    %v141 = vadd.f32 %v67, %v68
    %142 = vadd.xlane.f32.xlu0 %v141
    %v143 = vpop.xlane.xlu0 %142
    %v144 = vadd.f32 %v69, %v70
    %145 = vadd.xlane.f32.xlu0 %v144
    %v146 = vpop.xlane.xlu0 %145
    %v147 = vadd.f32 %v71, %v72
    %148 = vadd.xlane.f32.xlu0 %v147
    %v149 = vpop.xlane.xlu0 %148
    %v150 = vadd.f32 %v73, %v74
    %151 = vadd.xlane.f32.xlu0 %v150
    %v152 = vpop.xlane.xlu0 %151
    %v153 = vadd.f32 %v75, %v76
    %154 = vadd.xlane.f32.xlu0 %v153
    %v155 = vpop.xlane.xlu0 %154
    %v156 = vadd.f32 %v77, %v78
    %157 = vadd.xlane.f32.xlu0 %v156
    %v158 = vpop.xlane.xlu0 %157
    %v159 = vadd.f32 %v79, %v80
    %160 = vadd.xlane.f32.xlu0 %v159
    %v161 = vpop.xlane.xlu0 %160
    %v162 = vadd.f32 %v81, %v82
    %163 = vadd.xlane.f32.xlu0 %v162
    %v164 = vpop.xlane.xlu0 %163
    %v165 = vadd.f32 %v83, %v84
    %166 = vadd.xlane.f32.xlu0 %v165
    %v167 = vpop.xlane.xlu0 %166
    %v168 = vadd.f32 %v85, %v86
    %169 = vadd.xlane.f32.xlu0 %v168
    %v170 = vpop.xlane.xlu0 %169
    %v171 = vadd.f32 %v87, %v88
    %172 = vadd.xlane.f32.xlu0 %v171
    %v173 = vpop.xlane.xlu0 %172
    %v174 = vadd.f32 %v89, %v90
    %175 = vadd.xlane.f32.xlu0 %v174
    %v176 = vpop.xlane.xlu0 %175
    %v177 = vadd.f32 %v91, %v92
    %178 = vadd.xlane.f32.xlu0 %v177
    %v179 = vpop.xlane.xlu0 %178
    %v180 = vadd.f32 %v93, %v94
    %181 = vadd.xlane.f32.xlu0 %v180
    %v182 = vpop.xlane.xlu0 %181
    %v183 = vadd.f32 %v95, %v96
    %184 = vadd.xlane.f32.xlu0 %v183
    %v185 = vpop.xlane.xlu0 %184
    %v186 = vadd.f32 %v97, %v98
    %187 = vadd.xlane.f32.xlu0 %v186
    %v188 = vpop.xlane.xlu0 %187
    %v189 = vadd.f32 %v99, %v100
    %190 = vadd.xlane.f32.xlu0 %v189
    %v191 = vpop.xlane.xlu0 %190
    %v192 = vadd.f32 %v101, %v102
    %193 = vadd.xlane.f32.xlu0 %v192
    %v194 = vpop.xlane.xlu0 %193
    %v195 = vadd.f32 %v103, %v104
    %196 = vadd.xlane.f32.xlu0 %v195
    %v197 = vpop.xlane.xlu0 %196
    %v198 = vadd.f32 %v105, %v106
    %199 = vadd.xlane.f32.xlu0 %v198
    %v200 = vpop.xlane.xlu0 %199
    %v201 = vadd.f32 %v107, %v108
    %202 = vadd.xlane.f32.xlu0 %v201
    %v203 = vpop.xlane.xlu0 %202
    %v204 = vadd.f32 %v109, %v110
    %205 = vadd.xlane.f32.xlu0 %v204
    %v206 = vpop.xlane.xlu0 %205
    %v207 = vmul.f32 %v113, 0.00390625
    %v208 = vmul.f32 %v116, 0.00390625
    %v209 = vmul.f32 %v119, 0.00390625
    %v210 = vmul.f32 %v122, 0.00390625
    %v211 = vmul.f32 %v125, 0.00390625
    %v212 = vmul.f32 %v128, 0.00390625
    %v213 = vmul.f32 %v131, 0.00390625
    %v214 = vmul.f32 %v134, 0.00390625
    %v215 = vmul.f32 %v137, 0.00390625
    %v216 = vmul.f32 %v140, 0.00390625
    %v217 = vmul.f32 %v143, 0.00390625
    %v218 = vmul.f32 %v146, 0.00390625
    %v219 = vmul.f32 %v149, 0.00390625
    %v220 = vmul.f32 %v152, 0.00390625
    %v221 = vmul.f32 %v155, 0.00390625
    %v222 = vmul.f32 %v158, 0.00390625
    %v223 = vmul.f32 %v161, 0.00390625
    %v224 = vmul.f32 %v164, 0.00390625
    %v225 = vmul.f32 %v167, 0.00390625
    %v226 = vmul.f32 %v170, 0.00390625
    %v227 = vmul.f32 %v173, 0.00390625
    %v228 = vmul.f32 %v176, 0.00390625
    %v229 = vmul.f32 %v179, 0.00390625
    %v230 = vmul.f32 %v182, 0.00390625
    %v231 = vmul.f32 %v185, 0.00390625
    %v232 = vmul.f32 %v188, 0.00390625
    %v233 = vmul.f32 %v191, 0.00390625
    %v234 = vmul.f32 %v194, 0.00390625
    %v235 = vmul.f32 %v197, 0.00390625
    %v236 = vmul.f32 %v200, 0.00390625
    %v237 = vmul.f32 %v203, 0.00390625
    %v238 = vmul.f32 %v206, 0.00390625
    %v239 = vld [vmem:[#allocation5] sm:$0xff]
    %v240 = vld [vmem:[#allocation5 + $0x8] sm:$0xff]
    %v241 = vld [vmem:[#allocation5 + $0x10] sm:$0xff]
    %v242 = vld [vmem:[#allocation5 + $0x18] sm:$0xff]
    %v243 = vld [vmem:[%s2] sm:$0x1]
    %v245 = vperm.slane %v243, 0
    %v279 = vlaneseq
    %v280 = vand.u32 %v279, 127
    %v281 = vperm.slane %v207, %v280
    %v282 = vadd.s32 %v280, 4294967288
    %v283 = vperm.slane %v208, %v282
    %vm284 = vcmask 130112
    %v285 = vsel %vm284, %v283, %v281
    %v286 = vadd.s32 %v280, 4294967280
    %v287 = vperm.slane %v209, %v286
    %vm288 = vcmask 195712
    %v289 = vsel %vm288, %v287, %v285
    %v290 = vadd.s32 %v280, 4294967272
    %v291 = vperm.slane %v210, %v290
    %vm292 = vcmask 261312
    %v293 = vsel %vm292, %v291, %v289
    %v294 = vperm.slane %v211, %v280
    %v295 = vperm.slane %v212, %v282
    %v296 = vsel %vm284, %v295, %v294
    %v297 = vperm.slane %v213, %v286
    %v298 = vsel %vm288, %v297, %v296
    %v299 = vperm.slane %v214, %v290
    %v300 = vsel %vm292, %v299, %v298
    %v301 = vperm.slane %v215, %v280
    %v302 = vperm.slane %v216, %v282
    %v303 = vsel %vm284, %v302, %v301
    %v304 = vperm.slane %v217, %v286
    %v305 = vsel %vm288, %v304, %v303
    %v306 = vperm.slane %v218, %v290
    %v307 = vsel %vm292, %v306, %v305
    %v308 = vperm.slane %v219, %v280
    %v309 = vperm.slane %v220, %v282
    %v310 = vsel %vm284, %v309, %v308
    %v311 = vperm.slane %v221, %v286
    %v312 = vsel %vm288, %v311, %v310
    %v313 = vperm.slane %v222, %v290
    %v314 = vsel %vm292, %v313, %v312
    %v315 = vperm.slane %v223, %v280
    %v316 = vperm.slane %v224, %v282
    %v317 = vsel %vm284, %v316, %v315
    %v318 = vperm.slane %v225, %v286
    %v319 = vsel %vm288, %v318, %v317
    %v320 = vperm.slane %v226, %v290
    %v321 = vsel %vm292, %v320, %v319
    %v322 = vperm.slane %v227, %v280
    %v323 = vperm.slane %v228, %v282
    %v324 = vsel %vm284, %v323, %v322
    %v325 = vperm.slane %v229, %v286
    %v326 = vsel %vm288, %v325, %v324
    %v327 = vperm.slane %v230, %v290
    %v328 = vsel %vm292, %v327, %v326
    %v329 = vperm.slane %v231, %v280
    %v330 = vperm.slane %v232, %v282
    %v331 = vsel %vm284, %v330, %v329
    %v332 = vperm.slane %v233, %v286
    %v333 = vsel %vm288, %v332, %v331
    %v334 = vperm.slane %v234, %v290
    %v335 = vsel %vm292, %v334, %v333
    %v336 = vperm.slane %v235, %v280
    %v337 = vperm.slane %v236, %v282
    %v338 = vsel %vm284, %v337, %v336
    %v339 = vperm.slane %v237, %v286
    %v340 = vsel %vm288, %v339, %v338
    %v341 = vperm.slane %v238, %v290
    %v342 = vsel %vm292, %v341, %v340
    %vm343 = vcmask 1041409
    %v344 = vsel %vm343, %v300, %v293
    %vm345 = vcmask 1042434
    %v346 = vsel %vm345, %v307, %v344
    %vm347 = vcmask 1043459
    %v348 = vsel %vm347, %v314, %v346
    %vm349 = vcmask 1044484
    %v350 = vsel %vm349, %v321, %v348
    %vm351 = vcmask 1045509
    %v352 = vsel %vm351, %v328, %v350
    %vm353 = vcmask 1046534
    %v354 = vsel %vm353, %v335, %v352
    %vm355 = vcmask 1047559
    %v356 = vsel %vm355, %v342, %v354
    %vm357 = vcmask 261120
    %v358 = vsel %vm357, %v356, 0
    %360 = vmatpush.msra.mxu0 0.0
    %361 = vmatpush.msra.mxu0 0.0
    %362 = vmatpush.msra.mxu0 0.0
    %363 = vmatpush.msra.mxu0 0.0
    %364 = vmatpush.msra.mxu0 0.0
    %365 = vmatpush.msra.mxu0 0.0
    %366 = vmatpush.msra.mxu0 0.0
    %367 = vmatpush.msra.mxu0 0.0
    %368 = vmatpush.msra.mxu0 0.0
    %369 = vmatpush.msra.mxu0 0.0
    %370 = vmatpush.msra.mxu0 0.0
    %371 = vmatpush.msra.mxu0 0.0
    %v372 = vand.u32 %v242, 4294901760
    %373 = vmatpush.msra.mxu0 %v372
    %v374 = vand.u32 %v241, 4294901760
    %375 = vmatpush.msra.mxu0 %v374
    %v376 = vand.u32 %v240, 4294901760
    %377 = vmatpush.msra.mxu0 %v376
    %v378 = vand.u32 %v239, 4294901760
    %379 = vmatpush.msra.mxu0 %v378
    %v380 = vand.u32 %v358, 4294901760
    %v381 = vsub.f32 %v358, %v380
    %v382 = vand.u32 %v381, 4294901760
    %v383 = vsub.f32 %v381, %v382
    %v384 = vand.u32 %v383, 4294901760
    %385 = vmatmul.f32.gmra.mxu0 %v384
    %v386 = vpop.f32.mrf.mxu0
    %v387 = vadd.f32 %v245, %v386
    %388 = vdwg.mxu0
    %389 = vmatpush.msra.mxu0 0.0
    %390 = vmatpush.msra.mxu0 0.0
    %391 = vmatpush.msra.mxu0 0.0
    %392 = vmatpush.msra.mxu0 0.0
    %393 = vmatpush.msra.mxu0 0.0
    %394 = vmatpush.msra.mxu0 0.0
    %395 = vmatpush.msra.mxu0 0.0
    %396 = vmatpush.msra.mxu0 0.0
    %397 = vmatpush.msra.mxu0 0.0
    %398 = vmatpush.msra.mxu0 0.0
    %399 = vmatpush.msra.mxu0 0.0
    %400 = vmatpush.msra.mxu0 0.0
    %v401 = vand.u32 %v242, 4294901760
    %v402 = vsub.f32 %v242, %v401
    %v403 = vand.u32 %v402, 4294901760
    %v404 = vsub.f32 %v402, %v403
    %v405 = vand.u32 %v404, 4294901760
    %406 = vmatpush.msra.mxu0 %v405
    %v407 = vand.u32 %v241, 4294901760
    %v408 = vsub.f32 %v241, %v407
    %v409 = vand.u32 %v408, 4294901760
    %v410 = vsub.f32 %v408, %v409
    %v411 = vand.u32 %v410, 4294901760
    %412 = vmatpush.msra.mxu0 %v411
    %v413 = vand.u32 %v240, 4294901760
    %v414 = vsub.f32 %v240, %v413
    %v415 = vand.u32 %v414, 4294901760
    %v416 = vsub.f32 %v414, %v415
    %v417 = vand.u32 %v416, 4294901760
    %418 = vmatpush.msra.mxu0 %v417
    %v419 = vand.u32 %v239, 4294901760
    %v420 = vsub.f32 %v239, %v419
    %v421 = vand.u32 %v420, 4294901760
    %v422 = vsub.f32 %v420, %v421
    %v423 = vand.u32 %v422, 4294901760
    %424 = vmatpush.msra.mxu0 %v423
    %v425 = vand.u32 %v358, 4294901760
    %426 = vmatmul.f32.gmra.mxu0 %v425
    %v427 = vpop.f32.mrf.mxu0
    %v428 = vadd.f32 %v387, %v427
    %429 = vdwg.mxu0
    %430 = vmatpush.msra.mxu0 0.0
    %431 = vmatpush.msra.mxu0 0.0
    %432 = vmatpush.msra.mxu0 0.0
    %433 = vmatpush.msra.mxu0 0.0
    %434 = vmatpush.msra.mxu0 0.0
    %435 = vmatpush.msra.mxu0 0.0
    %436 = vmatpush.msra.mxu0 0.0
    %437 = vmatpush.msra.mxu0 0.0
    %438 = vmatpush.msra.mxu0 0.0
    %439 = vmatpush.msra.mxu0 0.0
    %440 = vmatpush.msra.mxu0 0.0
    %441 = vmatpush.msra.mxu0 0.0
    %v442 = vand.u32 %v242, 4294901760
    %v443 = vsub.f32 %v242, %v442
    %444 = vmatpush.msra.mxu0 %v443
    %v445 = vand.u32 %v241, 4294901760
    %v446 = vsub.f32 %v241, %v445
    %447 = vmatpush.msra.mxu0 %v446
    %v448 = vand.u32 %v240, 4294901760
    %v449 = vsub.f32 %v240, %v448
    %450 = vmatpush.msra.mxu0 %v449
    %v451 = vand.u32 %v239, 4294901760
    %v452 = vsub.f32 %v239, %v451
    %453 = vmatpush.msra.mxu0 %v452
    %v454 = vand.u32 %v358, 4294901760
    %v455 = vsub.f32 %v358, %v454
    %456 = vmatmul.f32.gmra.mxu0 %v455
    %v457 = vpop.f32.mrf.mxu0
    %v458 = vadd.f32 %v428, %v457
    %459 = vdwg.mxu0
    %460 = vmatpush.msra.mxu0 0.0
    %461 = vmatpush.msra.mxu0 0.0
    %462 = vmatpush.msra.mxu0 0.0
    %463 = vmatpush.msra.mxu0 0.0
    %464 = vmatpush.msra.mxu0 0.0
    %465 = vmatpush.msra.mxu0 0.0
    %466 = vmatpush.msra.mxu0 0.0
    %467 = vmatpush.msra.mxu0 0.0
    %468 = vmatpush.msra.mxu0 0.0
    %469 = vmatpush.msra.mxu0 0.0
    %470 = vmatpush.msra.mxu0 0.0
    %471 = vmatpush.msra.mxu0 0.0
    %v472 = vand.u32 %v242, 4294901760
    %473 = vmatpush.msra.mxu0 %v472
    %v474 = vand.u32 %v241, 4294901760
    %475 = vmatpush.msra.mxu0 %v474
    %v476 = vand.u32 %v240, 4294901760
    %477 = vmatpush.msra.mxu0 %v476
    %v478 = vand.u32 %v239, 4294901760
    %479 = vmatpush.msra.mxu0 %v478
    %v480 = vand.u32 %v358, 4294901760
    %v481 = vsub.f32 %v358, %v480
    %v482 = vand.u32 %v481, 4294901760
    %483 = vmatmul.f32.gmra.mxu0 %v482
    %v484 = vpop.f32.mrf.mxu0
    %v485 = vadd.f32 %v458, %v484
    %486 = vdwg.mxu0
    %487 = vmatpush.msra.mxu0 0.0
    %488 = vmatpush.msra.mxu0 0.0
    %489 = vmatpush.msra.mxu0 0.0
    %490 = vmatpush.msra.mxu0 0.0
    %491 = vmatpush.msra.mxu0 0.0
    %492 = vmatpush.msra.mxu0 0.0
    %493 = vmatpush.msra.mxu0 0.0
    %494 = vmatpush.msra.mxu0 0.0
    %495 = vmatpush.msra.mxu0 0.0
    %496 = vmatpush.msra.mxu0 0.0
    %497 = vmatpush.msra.mxu0 0.0
    %498 = vmatpush.msra.mxu0 0.0
    %v499 = vand.u32 %v242, 4294901760
    %v500 = vsub.f32 %v242, %v499
    %v501 = vand.u32 %v500, 4294901760
    %502 = vmatpush.msra.mxu0 %v501
    %v503 = vand.u32 %v241, 4294901760
    %v504 = vsub.f32 %v241, %v503
    %v505 = vand.u32 %v504, 4294901760
    %506 = vmatpush.msra.mxu0 %v505
    %v507 = vand.u32 %v240, 4294901760
    %v508 = vsub.f32 %v240, %v507
    %v509 = vand.u32 %v508, 4294901760
    %510 = vmatpush.msra.mxu0 %v509
    %v511 = vand.u32 %v239, 4294901760
    %v512 = vsub.f32 %v239, %v511
    %v513 = vand.u32 %v512, 4294901760
    %514 = vmatpush.msra.mxu0 %v513
    %v515 = vand.u32 %v358, 4294901760
    %516 = vmatmul.f32.gmra.mxu0 %v515
    %v517 = vpop.f32.mrf.mxu0
    %v518 = vadd.f32 %v485, %v517
    %519 = vdwg.mxu0
    %520 = vmatpush.msra.mxu0 0.0
    %521 = vmatpush.msra.mxu0 0.0
    %522 = vmatpush.msra.mxu0 0.0
    %523 = vmatpush.msra.mxu0 0.0
    %524 = vmatpush.msra.mxu0 0.0
    %525 = vmatpush.msra.mxu0 0.0
    %526 = vmatpush.msra.mxu0 0.0
    %527 = vmatpush.msra.mxu0 0.0
    %528 = vmatpush.msra.mxu0 0.0
    %529 = vmatpush.msra.mxu0 0.0
    %530 = vmatpush.msra.mxu0 0.0
    %531 = vmatpush.msra.mxu0 0.0
    %v532 = vand.u32 %v242, 4294901760
    %533 = vmatpush.msra.mxu0 %v532
    %v534 = vand.u32 %v241, 4294901760
    %535 = vmatpush.msra.mxu0 %v534
    %v536 = vand.u32 %v240, 4294901760
    %537 = vmatpush.msra.mxu0 %v536
    %v538 = vand.u32 %v239, 4294901760
    %539 = vmatpush.msra.mxu0 %v538
    %v540 = vand.u32 %v358, 4294901760
    %541 = vmatmul.f32.gmra.mxu0 %v540
    %v542 = vpop.f32.mrf.mxu0
    %v543 = vadd.f32 %v518, %v542
    %544 = vdwg.mxu0
    %545 = vst [vmem:[#allocation7] sm:$0xff] %v543
    %546 = vst [vmem:[#allocation7 + $0x8] sm:$0xff] %v543
    // Predicated region
    $region22: #{tpu_custom_call.1} parent=1 // pred_check
      _
    $region23: #{tpu_custom_call.1} parent=1 // pred_check_branch
      %548 = sbr.rel (0) target = $region25
    $region24: #{tpu_custom_call.1} parent=1 // pred_region
      %550 = vsyncadd [#allocation4], 0
      %s552 = sshll.u32 [#allocation7], 4
      %s553 = int_to_ptr.vmem [resolvable:$true] %s552
      %s554 = sshll.u32 %s3, 4
      %s555 = int_to_ptr.hbm [resolvable:$true] %s554
      %557 = dma.vmem_to_hbm [thread:$0]  %s553, 256, %s555, [#allocation4]
    $region25: #{tpu_custom_call.1} parent=1 // pred_fallthru
      _
    // Predicated region
    $region26: #{tpu_custom_call.1} parent=1 // pred_check
      _
    $region27: #{tpu_custom_call.1} parent=1 // pred_check_branch
      %559 = sbr.rel (0) target = $region29
    $region28: #{tpu_custom_call.1} parent=1 // pred_region
      %561 = dma.done [#allocation4], 256
    $region29: #{tpu_custom_call.1} parent=1 // pred_fallthru
      _
    %562 = vsyncpa [#allocation3], 1
    %563 = vsyncpa [#allocation6], 1
    %564 = vsyncpa [#allocation4], 1

</llo_original>
